<compile_context>
chip_gen: v5e
topology: v5e:2x2
jax: 0.10.0
libtpu: 0.0.40
codegen_flags: <defaults>
</compile_context>

<pallas_src>
import jax
import jax.numpy as jnp
from jax.experimental import pallas as pl

# ----------------------------- config -------------------------------------
B = 2          # batch
T = 8          # n_ctx (sequence length)
D = 32         # n_state
H = 4          # n_head
HD = D // H    # head dim
D_MLP = 4 * D
LN_EPS = 1e-5

BT = B * T               # 16 activation rows
LANE = 128
FOLD = LANE // D         # 4 activation rows fold into one 128-lane output row
OUT_ROWS = BT // FOLD    # 4


# ----------------------------- kernel --------------------------------------
def _layer_norm(x, gamma, beta):
    # x: (N, D) float32 ; gamma/beta: (1, D)
    mu = jnp.mean(x, axis=-1, keepdims=True)
    var = jnp.mean((x - mu) ** 2, axis=-1, keepdims=True)
    return (x - mu) * jax.lax.rsqrt(var + LN_EPS) * gamma + beta


def _gelu_exact(x):
    # nn.GELU() default = exact erf formulation (kept exact for numerics)
    return 0.5 * x * (1.0 + jax.lax.erf(x * 0.7071067811865476))


def residual_block_kernel(x_ref, wqkv_ref, bqkv_ref, wo_ref,
                          w1_ref, b1_ref, w2_ref, vecs_ref, o_ref):
    x = x_ref[...]                                   # (BT, D) float32
    vecs = vecs_ref[...]                             # (6, D)
    g_attn, b_attn = vecs[0:1], vecs[1:2]
    g_mlp, b_mlp = vecs[2:3], vecs[3:4]
    b_out, b2 = vecs[4:5], vecs[5:6]

    # ---------------- self attention ----------------
    ln = _layer_norm(x, g_attn, b_attn)
    # fused QKV projection; weights already (in, out), attn scale folded into Q
    qkv = jnp.dot(ln, wqkv_ref[...],
                  preferred_element_type=jnp.float32) + bqkv_ref[...]   # (BT, 3D)
    qkv = qkv.reshape(B, T, 3 * D)                   # split leading dim only

    head_outs = []
    for h in range(H):                               # static head loop, B-batched
        qh = qkv[:, :, h * HD:(h + 1) * HD]                      # (B, T, HD)
        kh = qkv[:, :, D + h * HD:D + (h + 1) * HD]              # (B, T, HD)
        vh = qkv[:, :, 2 * D + h * HD:2 * D + (h + 1) * HD]      # (B, T, HD)
        s = jnp.einsum('bqd,bkd->bqk', qh, kh,
                       preferred_element_type=jnp.float32)       # (B, T, T)
        m = jnp.max(s, axis=-1, keepdims=True)
        e = jnp.exp(s - m)
        p = e * pl.reciprocal(jnp.sum(e, axis=-1, keepdims=True), approx=True)
        head_outs.append(jnp.einsum('bqk,bkd->bqd', p, vh,
                                    preferred_element_type=jnp.float32))
    wv = jnp.concatenate(head_outs, axis=-1).reshape(BT, D)      # head concat

    x = x + jnp.dot(wv, wo_ref[...], preferred_element_type=jnp.float32) + b_out

    # ---------------- MLP ----------------
    ln2 = _layer_norm(x, g_mlp, b_mlp)
    h1 = jnp.dot(ln2, w1_ref[...], preferred_element_type=jnp.float32) + b1_ref[...]
    h1 = _gelu_exact(h1)
    x = x + jnp.dot(h1, w2_ref[...], preferred_element_type=jnp.float32) + b2

    # lane-dense output: pack (BT, D) -> (OUT_ROWS, 128) so stores are unmasked
    o_ref[...] = jnp.concatenate(
        [x[j * OUT_ROWS:(j + 1) * OUT_ROWS] for j in range(FOLD)], axis=-1)


# ----------------------------- wrapper --------------------------------------
def residual_attention_block(x, params):
    """x: (B, T, D) float32. Returns (B, T, D) float32."""
    s2 = HD ** (-0.5)  # == (HD**-0.25)**2, folded one-sided into the Q proj

    # host/XLA-side one-time layout work: pre-transpose to (in, out) + fuse
    w_qkv = jnp.concatenate(
        [params["wq"].T * s2, params["wk"].T, params["wv"].T], axis=1)       # (D, 3D)
    b_qkv = jnp.concatenate(
        [params["bq"] * s2, jnp.zeros((1, D), jnp.float32), params["bv"]],
        axis=1)                                                              # (1, 3D)
    vecs = jnp.concatenate(
        [params["g_attn"], params["b_attn"], params["g_mlp"], params["b_mlp"],
         params["bo"], params["b2"]], axis=0)                                # (6, D)

    fn = pl.pallas_call(
        residual_block_kernel,
        out_shape=jax.ShapeDtypeStruct((OUT_ROWS, LANE), jnp.float32),
    )
    out4 = fn(
        x.reshape(BT, D),
        w_qkv, b_qkv,
        params["wo"].T,
        params["w1"].T, params["b1"],
        params["w2"].T,
        vecs,
    )
    # undo the lane-dense packing: (OUT_ROWS, FOLD*D) -> (B, T, D)
    return out4.reshape(OUT_ROWS, FOLD, D).transpose(1, 0, 2).reshape(B, T, D)


# ----------------------------- pure-JAX reference ---------------------------
def reference(x, p):
    def ln(x, g, b):
        mu = x.mean(-1, keepdims=True)
        var = ((x - mu) ** 2).mean(-1, keepdims=True)
        return (x - mu) / jnp.sqrt(var + LN_EPS) * g + b

    h = ln(x, p["g_attn"], p["b_attn"])
    q = h @ p["wq"].T + p["bq"]
    k = h @ p["wk"].T
    v = h @ p["wv"].T + p["bv"]
    scale = HD ** (-0.25)
    qh = q.reshape(B, T, H, HD).transpose(0, 2, 1, 3) * scale
    kh = k.reshape(B, T, H, HD).transpose(0, 2, 3, 1) * scale
    vh = v.reshape(B, T, H, HD).transpose(0, 2, 1, 3)
    qk = qh @ kh
    w = jax.nn.softmax(qk, axis=-1)
    wv = (w @ vh).transpose(0, 2, 1, 3).reshape(B, T, D)
    x = x + (wv @ p["wo"].T + p["bo"])
    h2 = ln(x, p["g_mlp"], p["b_mlp"])
    h2 = h2 @ p["w1"].T + p["b1"]
    h2 = 0.5 * h2 * (1.0 + jax.lax.erf(h2 / jnp.sqrt(2.0)))
    h2 = h2 @ p["w2"].T + p["b2"]
    return x + h2


# ----------------------------- main ------------------------------------------
def make_params(key):
    ks = jax.random.split(key, 8)
    s = 0.02
    return {
        "wq": jax.random.normal(ks[0], (D, D), jnp.float32) * s,
        "bq": jax.random.normal(ks[1], (1, D), jnp.float32) * s,
        "wk": jax.random.normal(ks[2], (D, D), jnp.float32) * s,
        "wv": jax.random.normal(ks[3], (D, D), jnp.float32) * s,
        "bv": jnp.zeros((1, D), jnp.float32),
        "wo": jax.random.normal(ks[4], (D, D), jnp.float32) * s,
        "bo": jnp.zeros((1, D), jnp.float32),
        "g_attn": jnp.ones((1, D), jnp.float32),
        "b_attn": jnp.zeros((1, D), jnp.float32),
        "w1": jax.random.normal(ks[5], (D_MLP, D), jnp.float32) * s,
        "b1": jax.random.normal(ks[6], (1, D_MLP), jnp.float32) * s,
        "w2": jax.random.normal(ks[7], (D, D_MLP), jnp.float32) * s,
        "b2": jnp.zeros((1, D), jnp.float32),
        "g_mlp": jnp.ones((1, D), jnp.float32),
        "b_mlp": jnp.zeros((1, D), jnp.float32),
    }


if __name__ == "__main__":
    key = jax.random.PRNGKey(0)
    kx, kp = jax.random.split(key)
    x = jax.random.normal(kx, (B, T, D), jnp.float32)
    params = make_params(kp)

    out = jax.block_until_ready(residual_attention_block(x, params))

    ref = reference(x, params)
    assert out.shape == (B, T, D)
    assert jnp.allclose(out, ref, atol=1e-4, rtol=1e-4), "mismatch vs reference"

    print("KERNEL_OK")
</pallas_src>

<mosaic_0001>
module attributes {stable_mosaic.version = 11 : i64} {
  func.func @residual_block_kernel(%arg0: memref<16x32xf32, #tpu.memory_space<vmem>>, %arg1: memref<32x96xf32, #tpu.memory_space<vmem>>, %arg2: memref<1x96xf32, #tpu.memory_space<vmem>>, %arg3: memref<32x32xf32, #tpu.memory_space<vmem>>, %arg4: memref<32x128xf32, #tpu.memory_space<vmem>>, %arg5: memref<1x128xf32, #tpu.memory_space<vmem>>, %arg6: memref<128x32xf32, #tpu.memory_space<vmem>>, %arg7: memref<6x32xf32, #tpu.memory_space<vmem>>, %arg8: memref<4x128xf32, #tpu.memory_space<vmem>>) attributes {dimension_semantics = [], scalar_prefetch = 0 : i64, scratch_operands = 0 : i64, tpu.core_type = #tpu.core_type<tc>} {
    %c0 = arith.constant 0 : index
    %c0_0 = arith.constant 0 : index
    %0 = vector.load %arg0[%c0, %c0_0] : memref<16x32xf32, #tpu.memory_space<vmem>>, vector<16x32xf32>
    %c0_1 = arith.constant 0 : index
    %c0_2 = arith.constant 0 : index
    %1 = vector.load %arg7[%c0_1, %c0_2] : memref<6x32xf32, #tpu.memory_space<vmem>>, vector<6x32xf32>
    %2 = vector.extract_strided_slice %1 {offsets = [0, 0], sizes = [1, 32], strides = [1, 1]} : vector<6x32xf32> to vector<1x32xf32>
    %3 = vector.extract_strided_slice %1 {offsets = [1, 0], sizes = [1, 32], strides = [1, 1]} : vector<6x32xf32> to vector<1x32xf32>
    %4 = vector.extract_strided_slice %1 {offsets = [2, 0], sizes = [1, 32], strides = [1, 1]} : vector<6x32xf32> to vector<1x32xf32>
    %5 = vector.extract_strided_slice %1 {offsets = [3, 0], sizes = [1, 32], strides = [1, 1]} : vector<6x32xf32> to vector<1x32xf32>
    %6 = vector.extract_strided_slice %1 {offsets = [4, 0], sizes = [1, 32], strides = [1, 1]} : vector<6x32xf32> to vector<1x32xf32>
    %7 = vector.extract_strided_slice %1 {offsets = [5, 0], sizes = [1, 32], strides = [1, 1]} : vector<6x32xf32> to vector<1x32xf32>
    %cst = arith.constant dense<0.000000e+00> : vector<16xf32>
    %8 = vector.multi_reduction <add>, %0, %cst [1] : vector<16x32xf32> to vector<16xf32>
    %9 = vector.shape_cast %8 : vector<16xf32> to vector<16x1xf32>
    %cst_3 = arith.constant 3.200000e+01 : f32
    %10 = vector.broadcast %cst_3 : f32 to vector<16x1xf32>
    %11 = arith.divf %9, %10 : vector<16x1xf32>
    %12 = vector.broadcast %11 : vector<16x1xf32> to vector<16x32xf32>
    %13 = arith.subf %0, %12 : vector<16x32xf32>
    %14 = arith.mulf %13, %13 : vector<16x32xf32>
    %cst_4 = arith.constant dense<0.000000e+00> : vector<16xf32>
    %15 = vector.multi_reduction <add>, %14, %cst_4 [1] : vector<16x32xf32> to vector<16xf32>
    %16 = vector.shape_cast %15 : vector<16xf32> to vector<16x1xf32>
    %cst_5 = arith.constant 3.200000e+01 : f32
    %17 = vector.broadcast %cst_5 : f32 to vector<16x1xf32>
    %18 = arith.divf %16, %17 : vector<16x1xf32>
    %19 = vector.broadcast %11 : vector<16x1xf32> to vector<16x32xf32>
    %20 = arith.subf %0, %19 : vector<16x32xf32>
    %cst_6 = arith.constant 9.99999974E-6 : f32
    %21 = vector.broadcast %cst_6 : f32 to vector<16x1xf32>
    %22 = arith.addf %18, %21 : vector<16x1xf32>
    %23 = math.rsqrt %22 : vector<16x1xf32>
    %24 = vector.broadcast %23 : vector<16x1xf32> to vector<16x32xf32>
    %25 = arith.mulf %20, %24 : vector<16x32xf32>
    %26 = vector.broadcast %2 : vector<1x32xf32> to vector<16x32xf32>
    %27 = arith.mulf %25, %26 : vector<16x32xf32>
    %28 = vector.broadcast %3 : vector<1x32xf32> to vector<16x32xf32>
    %29 = arith.addf %27, %28 : vector<16x32xf32>
    %c0_7 = arith.constant 0 : index
    %c0_8 = arith.constant 0 : index
    %30 = vector.load %arg1[%c0_7, %c0_8] : memref<32x96xf32, #tpu.memory_space<vmem>>, vector<32x96xf32>
    %cst_9 = arith.constant dense<0.000000e+00> : vector<16x96xf32>
    %31 = tpu.matmul %29, %30, %cst_9 {dimension_numbers = #tpu.dot_dimension_numbers<[1], [0], [0], [1], [0, 0, 1, 1], [], []>} : vector<16x32xf32>, vector<32x96xf32>, vector<16x96xf32> -> vector<16x96xf32>
    %c0_10 = arith.constant 0 : index
    %c0_11 = arith.constant 0 : index
    %32 = vector.load %arg2[%c0_10, %c0_11] : memref<1x96xf32, #tpu.memory_space<vmem>>, vector<1x96xf32>
    %33 = vector.broadcast %32 : vector<1x96xf32> to vector<16x96xf32>
    %34 = arith.addf %31, %33 : vector<16x96xf32>
    %35 = vector.shape_cast %34 : vector<16x96xf32> to vector<2x8x96xf32>
    %36 = vector.extract_strided_slice %35 {offsets = [0, 0, 0], sizes = [2, 8, 8], strides = [1, 1, 1]} : vector<2x8x96xf32> to vector<2x8x8xf32>
    %37 = vector.extract_strided_slice %35 {offsets = [0, 0, 32], sizes = [2, 8, 8], strides = [1, 1, 1]} : vector<2x8x96xf32> to vector<2x8x8xf32>
    %38 = vector.extract_strided_slice %35 {offsets = [0, 0, 64], sizes = [2, 8, 8], strides = [1, 1, 1]} : vector<2x8x96xf32> to vector<2x8x8xf32>
    "tpu.trace_start"() <{level = 10 : i32, message = "bqd,bkd->bqk"}> : () -> ()
    %cst_12 = arith.constant dense<0.000000e+00> : vector<2x8x8xf32>
    %39 = tpu.matmul %36, %37, %cst_12 {dimension_numbers = #tpu.dot_dimension_numbers<[2], [2], [1], [1], [0, 0, 0, 1, 1, 1], [0], [0]>} : vector<2x8x8xf32>, vector<2x8x8xf32>, vector<2x8x8xf32> -> vector<2x8x8xf32>
    "tpu.trace_stop"() : () -> ()
    %cst_13 = arith.constant dense<0xFF800000> : vector<2x8xf32>
    %40 = vector.multi_reduction <maximumf>, %39, %cst_13 [2] : vector<2x8x8xf32> to vector<2x8xf32>
    %41 = vector.shape_cast %40 : vector<2x8xf32> to vector<2x8x1xf32>
    %42 = vector.broadcast %41 : vector<2x8x1xf32> to vector<2x8x8xf32>
    %43 = arith.subf %39, %42 : vector<2x8x8xf32>
    %44 = math.exp %43 : vector<2x8x8xf32>
    %cst_14 = arith.constant dense<0.000000e+00> : vector<2x8xf32>
    %45 = vector.multi_reduction <add>, %44, %cst_14 [2] : vector<2x8x8xf32> to vector<2x8xf32>
    %46 = vector.shape_cast %45 : vector<2x8xf32> to vector<2x8x1xf32>
    %47 = tpu.reciprocal %46 {approx = true} : vector<2x8x1xf32> -> vector<2x8x1xf32>
    %48 = vector.broadcast %47 : vector<2x8x1xf32> to vector<2x8x8xf32>
    %49 = arith.mulf %44, %48 : vector<2x8x8xf32>
    "tpu.trace_start"() <{level = 10 : i32, message = "bqk,bkd->bqd"}> : () -> ()
    %cst_15 = arith.constant dense<0.000000e+00> : vector<2x8x8xf32>
    %50 = tpu.matmul %49, %38, %cst_15 {dimension_numbers = #tpu.dot_dimension_numbers<[2], [1], [1], [2], [0, 0, 0, 1, 1, 2], [0], [0]>} : vector<2x8x8xf32>, vector<2x8x8xf32>, vector<2x8x8xf32> -> vector<2x8x8xf32>
    "tpu.trace_stop"() : () -> ()
    %51 = vector.extract_strided_slice %35 {offsets = [0, 0, 8], sizes = [2, 8, 8], strides = [1, 1, 1]} : vector<2x8x96xf32> to vector<2x8x8xf32>
    %52 = vector.extract_strided_slice %35 {offsets = [0, 0, 40], sizes = [2, 8, 8], strides = [1, 1, 1]} : vector<2x8x96xf32> to vector<2x8x8xf32>
    %53 = vector.extract_strided_slice %35 {offsets = [0, 0, 72], sizes = [2, 8, 8], strides = [1, 1, 1]} : vector<2x8x96xf32> to vector<2x8x8xf32>
    "tpu.trace_start"() <{level = 10 : i32, message = "bqd,bkd->bqk"}> : () -> ()
    %cst_16 = arith.constant dense<0.000000e+00> : vector<2x8x8xf32>
    %54 = tpu.matmul %51, %52, %cst_16 {dimension_numbers = #tpu.dot_dimension_numbers<[2], [2], [1], [1], [0, 0, 0, 1, 1, 1], [0], [0]>} : vector<2x8x8xf32>, vector<2x8x8xf32>, vector<2x8x8xf32> -> vector<2x8x8xf32>
    "tpu.trace_stop"() : () -> ()
    %cst_17 = arith.constant dense<0xFF800000> : vector<2x8xf32>
    %55 = vector.multi_reduction <maximumf>, %54, %cst_17 [2] : vector<2x8x8xf32> to vector<2x8xf32>
    %56 = vector.shape_cast %55 : vector<2x8xf32> to vector<2x8x1xf32>
    %57 = vector.broadcast %56 : vector<2x8x1xf32> to vector<2x8x8xf32>
    %58 = arith.subf %54, %57 : vector<2x8x8xf32>
    %59 = math.exp %58 : vector<2x8x8xf32>
    %cst_18 = arith.constant dense<0.000000e+00> : vector<2x8xf32>
    %60 = vector.multi_reduction <add>, %59, %cst_18 [2] : vector<2x8x8xf32> to vector<2x8xf32>
    %61 = vector.shape_cast %60 : vector<2x8xf32> to vector<2x8x1xf32>
    %62 = tpu.reciprocal %61 {approx = true} : vector<2x8x1xf32> -> vector<2x8x1xf32>
    %63 = vector.broadcast %62 : vector<2x8x1xf32> to vector<2x8x8xf32>
    %64 = arith.mulf %59, %63 : vector<2x8x8xf32>
    "tpu.trace_start"() <{level = 10 : i32, message = "bqk,bkd->bqd"}> : () -> ()
    %cst_19 = arith.constant dense<0.000000e+00> : vector<2x8x8xf32>
    %65 = tpu.matmul %64, %53, %cst_19 {dimension_numbers = #tpu.dot_dimension_numbers<[2], [1], [1], [2], [0, 0, 0, 1, 1, 2], [0], [0]>} : vector<2x8x8xf32>, vector<2x8x8xf32>, vector<2x8x8xf32> -> vector<2x8x8xf32>
    "tpu.trace_stop"() : () -> ()
    %66 = vector.extract_strided_slice %35 {offsets = [0, 0, 16], sizes = [2, 8, 8], strides = [1, 1, 1]} : vector<2x8x96xf32> to vector<2x8x8xf32>
    %67 = vector.extract_strided_slice %35 {offsets = [0, 0, 48], sizes = [2, 8, 8], strides = [1, 1, 1]} : vector<2x8x96xf32> to vector<2x8x8xf32>
    %68 = vector.extract_strided_slice %35 {offsets = [0, 0, 80], sizes = [2, 8, 8], strides = [1, 1, 1]} : vector<2x8x96xf32> to vector<2x8x8xf32>
    "tpu.trace_start"() <{level = 10 : i32, message = "bqd,bkd->bqk"}> : () -> ()
    %cst_20 = arith.constant dense<0.000000e+00> : vector<2x8x8xf32>
    %69 = tpu.matmul %66, %67, %cst_20 {dimension_numbers = #tpu.dot_dimension_numbers<[2], [2], [1], [1], [0, 0, 0, 1, 1, 1], [0], [0]>} : vector<2x8x8xf32>, vector<2x8x8xf32>, vector<2x8x8xf32> -> vector<2x8x8xf32>
    "tpu.trace_stop"() : () -> ()
    %cst_21 = arith.constant dense<0xFF800000> : vector<2x8xf32>
    %70 = vector.multi_reduction <maximumf>, %69, %cst_21 [2] : vector<2x8x8xf32> to vector<2x8xf32>
    %71 = vector.shape_cast %70 : vector<2x8xf32> to vector<2x8x1xf32>
    %72 = vector.broadcast %71 : vector<2x8x1xf32> to vector<2x8x8xf32>
    %73 = arith.subf %69, %72 : vector<2x8x8xf32>
    %74 = math.exp %73 : vector<2x8x8xf32>
    %cst_22 = arith.constant dense<0.000000e+00> : vector<2x8xf32>
    %75 = vector.multi_reduction <add>, %74, %cst_22 [2] : vector<2x8x8xf32> to vector<2x8xf32>
    %76 = vector.shape_cast %75 : vector<2x8xf32> to vector<2x8x1xf32>
    %77 = tpu.reciprocal %76 {approx = true} : vector<2x8x1xf32> -> vector<2x8x1xf32>
    %78 = vector.broadcast %77 : vector<2x8x1xf32> to vector<2x8x8xf32>
    %79 = arith.mulf %74, %78 : vector<2x8x8xf32>
    "tpu.trace_start"() <{level = 10 : i32, message = "bqk,bkd->bqd"}> : () -> ()
    %cst_23 = arith.constant dense<0.000000e+00> : vector<2x8x8xf32>
    %80 = tpu.matmul %79, %68, %cst_23 {dimension_numbers = #tpu.dot_dimension_numbers<[2], [1], [1], [2], [0, 0, 0, 1, 1, 2], [0], [0]>} : vector<2x8x8xf32>, vector<2x8x8xf32>, vector<2x8x8xf32> -> vector<2x8x8xf32>
    "tpu.trace_stop"() : () -> ()
    %81 = vector.extract_strided_slice %35 {offsets = [0, 0, 24], sizes = [2, 8, 8], strides = [1, 1, 1]} : vector<2x8x96xf32> to vector<2x8x8xf32>
    %82 = vector.extract_strided_slice %35 {offsets = [0, 0, 56], sizes = [2, 8, 8], strides = [1, 1, 1]} : vector<2x8x96xf32> to vector<2x8x8xf32>
    %83 = vector.extract_strided_slice %35 {offsets = [0, 0, 88], sizes = [2, 8, 8], strides = [1, 1, 1]} : vector<2x8x96xf32> to vector<2x8x8xf32>
    "tpu.trace_start"() <{level = 10 : i32, message = "bqd,bkd->bqk"}> : () -> ()
    %cst_24 = arith.constant dense<0.000000e+00> : vector<2x8x8xf32>
    %84 = tpu.matmul %81, %82, %cst_24 {dimension_numbers = #tpu.dot_dimension_numbers<[2], [2], [1], [1], [0, 0, 0, 1, 1, 1], [0], [0]>} : vector<2x8x8xf32>, vector<2x8x8xf32>, vector<2x8x8xf32> -> vector<2x8x8xf32>
    "tpu.trace_stop"() : () -> ()
    %cst_25 = arith.constant dense<0xFF800000> : vector<2x8xf32>
    %85 = vector.multi_reduction <maximumf>, %84, %cst_25 [2] : vector<2x8x8xf32> to vector<2x8xf32>
    %86 = vector.shape_cast %85 : vector<2x8xf32> to vector<2x8x1xf32>
    %87 = vector.broadcast %86 : vector<2x8x1xf32> to vector<2x8x8xf32>
    %88 = arith.subf %84, %87 : vector<2x8x8xf32>
    %89 = math.exp %88 : vector<2x8x8xf32>
    %cst_26 = arith.constant dense<0.000000e+00> : vector<2x8xf32>
    %90 = vector.multi_reduction <add>, %89, %cst_26 [2] : vector<2x8x8xf32> to vector<2x8xf32>
    %91 = vector.shape_cast %90 : vector<2x8xf32> to vector<2x8x1xf32>
    %92 = tpu.reciprocal %91 {approx = true} : vector<2x8x1xf32> -> vector<2x8x1xf32>
    %93 = vector.broadcast %92 : vector<2x8x1xf32> to vector<2x8x8xf32>
    %94 = arith.mulf %89, %93 : vector<2x8x8xf32>
    "tpu.trace_start"() <{level = 10 : i32, message = "bqk,bkd->bqd"}> : () -> ()
    %cst_27 = arith.constant dense<0.000000e+00> : vector<2x8x8xf32>
    %95 = tpu.matmul %94, %83, %cst_27 {dimension_numbers = #tpu.dot_dimension_numbers<[2], [1], [1], [2], [0, 0, 0, 1, 1, 2], [0], [0]>} : vector<2x8x8xf32>, vector<2x8x8xf32>, vector<2x8x8xf32> -> vector<2x8x8xf32>
    "tpu.trace_stop"() : () -> ()
    %96 = tpu.concatenate %50, %65, %80, %95 in 2 : vector<2x8x8xf32>, vector<2x8x8xf32>, vector<2x8x8xf32>, vector<2x8x8xf32> -> vector<2x8x32xf32>
    %97 = vector.shape_cast %96 : vector<2x8x32xf32> to vector<16x32xf32>
    %c0_28 = arith.constant 0 : index
    %c0_29 = arith.constant 0 : index
    %98 = vector.load %arg3[%c0_28, %c0_29] : memref<32x32xf32, #tpu.memory_space<vmem>>, vector<32x32xf32>
    %cst_30 = arith.constant dense<0.000000e+00> : vector<16x32xf32>
    %99 = tpu.matmul %97, %98, %cst_30 {dimension_numbers = #tpu.dot_dimension_numbers<[1], [0], [0], [1], [0, 0, 1, 1], [], []>} : vector<16x32xf32>, vector<32x32xf32>, vector<16x32xf32> -> vector<16x32xf32>
    %100 = arith.addf %0, %99 : vector<16x32xf32>
    %101 = vector.broadcast %6 : vector<1x32xf32> to vector<16x32xf32>
    %102 = arith.addf %100, %101 : vector<16x32xf32>
    %cst_31 = arith.constant dense<0.000000e+00> : vector<16xf32>
    %103 = vector.multi_reduction <add>, %102, %cst_31 [1] : vector<16x32xf32> to vector<16xf32>
    %104 = vector.shape_cast %103 : vector<16xf32> to vector<16x1xf32>
    %cst_32 = arith.constant 3.200000e+01 : f32
    %105 = vector.broadcast %cst_32 : f32 to vector<16x1xf32>
    %106 = arith.divf %104, %105 : vector<16x1xf32>
    %107 = vector.broadcast %106 : vector<16x1xf32> to vector<16x32xf32>
    %108 = arith.subf %102, %107 : vector<16x32xf32>
    %109 = arith.mulf %108, %108 : vector<16x32xf32>
    %cst_33 = arith.constant dense<0.000000e+00> : vector<16xf32>
    %110 = vector.multi_reduction <add>, %109, %cst_33 [1] : vector<16x32xf32> to vector<16xf32>
    %111 = vector.shape_cast %110 : vector<16xf32> to vector<16x1xf32>
    %cst_34 = arith.constant 3.200000e+01 : f32
    %112 = vector.broadcast %cst_34 : f32 to vector<16x1xf32>
    %113 = arith.divf %111, %112 : vector<16x1xf32>
    %114 = vector.broadcast %106 : vector<16x1xf32> to vector<16x32xf32>
    %115 = arith.subf %102, %114 : vector<16x32xf32>
    %cst_35 = arith.constant 9.99999974E-6 : f32
    %116 = vector.broadcast %cst_35 : f32 to vector<16x1xf32>
    %117 = arith.addf %113, %116 : vector<16x1xf32>
    %118 = math.rsqrt %117 : vector<16x1xf32>
    %119 = vector.broadcast %118 : vector<16x1xf32> to vector<16x32xf32>
    %120 = arith.mulf %115, %119 : vector<16x32xf32>
    %121 = vector.broadcast %4 : vector<1x32xf32> to vector<16x32xf32>
    %122 = arith.mulf %120, %121 : vector<16x32xf32>
    %123 = vector.broadcast %5 : vector<1x32xf32> to vector<16x32xf32>
    %124 = arith.addf %122, %123 : vector<16x32xf32>
    %c0_36 = arith.constant 0 : index
    %c0_37 = arith.constant 0 : index
    %125 = vector.load %arg4[%c0_36, %c0_37] : memref<32x128xf32, #tpu.memory_space<vmem>>, vector<32x128xf32>
    %cst_38 = arith.constant dense<0.000000e+00> : vector<16x128xf32>
    %126 = tpu.matmul %124, %125, %cst_38 {dimension_numbers = #tpu.dot_dimension_numbers<[1], [0], [0], [1], [0, 0, 1, 1], [], []>} : vector<16x32xf32>, vector<32x128xf32>, vector<16x128xf32> -> vector<16x128xf32>
    %c0_39 = arith.constant 0 : index
    %c0_40 = arith.constant 0 : index
    %127 = vector.load %arg5[%c0_39, %c0_40] : memref<1x128xf32, #tpu.memory_space<vmem>>, vector<1x128xf32>
    %128 = vector.broadcast %127 : vector<1x128xf32> to vector<16x128xf32>
    %129 = arith.addf %126, %128 : vector<16x128xf32>
    %cst_41 = arith.constant 5.000000e-01 : f32
    %130 = vector.broadcast %cst_41 : f32 to vector<16x128xf32>
    %131 = arith.mulf %130, %129 : vector<16x128xf32>
    %cst_42 = arith.constant 0.707106769 : f32
    %132 = vector.broadcast %cst_42 : f32 to vector<16x128xf32>
    %133 = arith.mulf %129, %132 : vector<16x128xf32>
    %134 = math.erf %133 : vector<16x128xf32>
    %cst_43 = arith.constant 1.000000e+00 : f32
    %135 = vector.broadcast %cst_43 : f32 to vector<16x128xf32>
    %136 = arith.addf %135, %134 : vector<16x128xf32>
    %137 = arith.mulf %131, %136 : vector<16x128xf32>
    %c0_44 = arith.constant 0 : index
    %c0_45 = arith.constant 0 : index
    %138 = vector.load %arg6[%c0_44, %c0_45] : memref<128x32xf32, #tpu.memory_space<vmem>>, vector<128x32xf32>
    %cst_46 = arith.constant dense<0.000000e+00> : vector<16x32xf32>
    %139 = tpu.matmul %137, %138, %cst_46 {dimension_numbers = #tpu.dot_dimension_numbers<[1], [0], [0], [1], [0, 0, 1, 1], [], []>} : vector<16x128xf32>, vector<128x32xf32>, vector<16x32xf32> -> vector<16x32xf32>
    %140 = arith.addf %102, %139 : vector<16x32xf32>
    %141 = vector.broadcast %7 : vector<1x32xf32> to vector<16x32xf32>
    %142 = arith.addf %140, %141 : vector<16x32xf32>
    %143 = vector.extract_strided_slice %142 {offsets = [0, 0], sizes = [4, 32], strides = [1, 1]} : vector<16x32xf32> to vector<4x32xf32>
    %144 = vector.extract_strided_slice %142 {offsets = [4, 0], sizes = [4, 32], strides = [1, 1]} : vector<16x32xf32> to vector<4x32xf32>
    %145 = vector.extract_strided_slice %142 {offsets = [8, 0], sizes = [4, 32], strides = [1, 1]} : vector<16x32xf32> to vector<4x32xf32>
    %146 = vector.extract_strided_slice %142 {offsets = [12, 0], sizes = [4, 32], strides = [1, 1]} : vector<16x32xf32> to vector<4x32xf32>
    %147 = tpu.concatenate %143, %144, %145, %146 in 1 : vector<4x32xf32>, vector<4x32xf32>, vector<4x32xf32>, vector<4x32xf32> -> vector<4x128xf32>
    %c0_47 = arith.constant 0 : index
    %c0_48 = arith.constant 0 : index
    %148 = vector.load %arg8[%c0_47, %c0_48] : memref<4x128xf32, #tpu.memory_space<vmem>>, vector<4x128xf32>
    tpu.vector_store %arg8[%c0_47, %c0_48], %147 {strides = array<i32>} : memref<4x128xf32, #tpu.memory_space<vmem>>, vector<4x128xf32>,
    return
  }
}

</mosaic_0001>

<llo_original>
// kernel: tpu_custom_call.1
$region0: #{tpu_custom_call.1}
  #allocation0 [shape = 'u32[]', space=smem, size = 0x4, offset = 0x4, fixed_abs, tag = 'smem constant byte address 0x4 - core index']
  #allocation1 [shape = 'u32[72,128]{1,0:T(1,128)}', space=vmem, size = 0x9000, scoped, tag = 'internal scratch']
  %s0 = inlined_call_operand.vmem [shape: f32[16,32], index: 0, kind: input, shape index: {}]
  %s1 = inlined_call_operand.vmem [shape: f32[32,96], index: 1, kind: input, shape index: {}]
  %s2 = inlined_call_operand.vmem [shape: f32[1,96], index: 2, kind: input, shape index: {}]
  %s3 = inlined_call_operand.vmem [shape: f32[32,32], index: 3, kind: input, shape index: {}]
  %s4 = inlined_call_operand.vmem [shape: f32[32,128], index: 4, kind: input, shape index: {}]
  %s5 = inlined_call_operand.vmem [shape: f32[1,128], index: 5, kind: input, shape index: {}]
  %s6 = inlined_call_operand.vmem [shape: f32[128,32], index: 6, kind: input, shape index: {}]
  %s7 = inlined_call_operand.vmem [shape: f32[6,32], index: 7, kind: input, shape index: {}]
  %s8 = inlined_call_operand.hbm [shape: f32[4,128], index: 8, kind: output, shape index: {}]
  %s9 = sld [smem:[#allocation0]]
  $region42: #{tpu_custom_call.1} parent=0
    _
  %s11 = ssub.s32 1, %s9
  %s12 = scalar_select 0, %s11, %s9
  $region1: #{tpu_custom_call.1} parent=0
    #allocation2 [shape = 'u8[2048]{0}', space=vmem, size = 0x800, scoped, tag = 'output window, operand 0, single buffered']
    #allocation3 [shape = 's32[1]{0}', space=sflag, size = 0x4, scoped, tag = 'scoped memory for tpu_custom_call.1']
    %13 = vsyncpa [#allocation3], 0
    // Predicated region
    $region2: #{tpu_custom_call.1} parent=1 // pred_check
      _
    $region3: #{tpu_custom_call.1} parent=1 // pred_check_branch
      %15 = sbr.rel (0) target = $region5
    $region4: #{tpu_custom_call.1} parent=1 // pred_region
      _
    $region5: #{tpu_custom_call.1} parent=1 // pred_fallthru
      _
    // Predicated region
    $region6: #{tpu_custom_call.1} parent=1 // pred_check
      _
    $region7: #{tpu_custom_call.1} parent=1 // pred_check_branch
      %17 = sbr.rel (0) target = $region9
    $region8: #{tpu_custom_call.1} parent=1 // pred_region
      _
    $region9: #{tpu_custom_call.1} parent=1 // pred_fallthru
      _
    // Predicated region
    $region10: #{tpu_custom_call.1} parent=1 // pred_check
      _
    $region11: #{tpu_custom_call.1} parent=1 // pred_check_branch
      %19 = sbr.rel (0) target = $region13
    $region12: #{tpu_custom_call.1} parent=1 // pred_region
      _
    $region13: #{tpu_custom_call.1} parent=1 // pred_fallthru
      _
    // Predicated region
    $region14: #{tpu_custom_call.1} parent=1 // pred_check
      _
    $region15: #{tpu_custom_call.1} parent=1 // pred_check_branch
      %21 = sbr.rel (0) target = $region17
    $region16: #{tpu_custom_call.1} parent=1 // pred_region
      _
    $region17: #{tpu_custom_call.1} parent=1 // pred_fallthru
      _
    // Predicated region
    $region18: #{tpu_custom_call.1} parent=1 // pred_check
      _
    $region19: #{tpu_custom_call.1} parent=1 // pred_check_branch
      %23 = sbr.rel (0) target = $region21
    $region20: #{tpu_custom_call.1} parent=1 // pred_region
      _
    $region21: #{tpu_custom_call.1} parent=1 // pred_fallthru
      _
    // Predicated region
    $region22: #{tpu_custom_call.1} parent=1 // pred_check
      _
    $region23: #{tpu_custom_call.1} parent=1 // pred_check_branch
      %25 = sbr.rel (0) target = $region25
    $region24: #{tpu_custom_call.1} parent=1 // pred_region
      _
    $region25: #{tpu_custom_call.1} parent=1 // pred_fallthru
      _
    // Predicated region
    $region26: #{tpu_custom_call.1} parent=1 // pred_check
      _
    $region27: #{tpu_custom_call.1} parent=1 // pred_check_branch
      %27 = sbr.rel (0) target = $region29
    $region28: #{tpu_custom_call.1} parent=1 // pred_region
      _
    $region29: #{tpu_custom_call.1} parent=1 // pred_fallthru
      _
    // Predicated region
    $region30: #{tpu_custom_call.1} parent=1 // pred_check
      _
    $region31: #{tpu_custom_call.1} parent=1 // pred_check_branch
      %29 = sbr.rel (0) target = $region33
    $region32: #{tpu_custom_call.1} parent=1 // pred_region
      _
    $region33: #{tpu_custom_call.1} parent=1 // pred_fallthru
      _
    %v30 = vld [vmem:[%s0] sm:$0xff]
    %v31 = vld [vmem:[%s0 + $0x8] sm:$0xff]
    %v32 = vld [vmem:[%s7] sm:$0x3f]
    %vm33 = vcmask 261120
    %v34 = vsel %vm33, %v30, 0.0
    %35 = vadd.xlane.f32.xlu0 %v34
    %v36 = vpop.xlane.xlu0 %35
    %v37 = vsel %vm33, %v31, 0.0
    %38 = vadd.xlane.f32.xlu0 %v37
    %v39 = vpop.xlane.xlu0 %38
    %v40 = vrcp.pop 32.0
    %v41 = vmul.f32 32.0, %v40
    %v42 = vsub.f32 1.0, %v41
    %v43 = vmul.f32 %v40, %v42
    %v44 = vadd.f32 %v40, %v43
    %vm45 = vweird.f32 %v40
    %v46 = vsel %vm45, %v40, %v44
    %v47 = vmul.f32 %v36, %v46
    %v48 = vmul.f32 %v39, %v46
    %v49 = vsub.f32 %v30, %v47
    %v50 = vsub.f32 %v31, %v48
    %v51 = vmul.f32 %v49, %v49
    %v52 = vmul.f32 %v50, %v50
    %v53 = vsel %vm33, %v51, 0.0
    %54 = vadd.xlane.f32.xlu0 %v53
    %v55 = vpop.xlane.xlu0 %54
    %v56 = vsel %vm33, %v52, 0.0
    %57 = vadd.xlane.f32.xlu0 %v56
    %v58 = vpop.xlane.xlu0 %57
    %v59 = vmul.f32 %v55, %v46
    %v60 = vmul.f32 %v58, %v46
    %v61 = vadd.f32 %v59, 1e-05
    %v62 = vadd.f32 %v60, 1e-05
    %v63 = vrsqrt.pop %v61
    %v64 = vmul.f32 %v63, %v61
    %v65 = vmul.f32 %v64, %v63
    %v66 = vmul.f32 0.5, %v65
    %v67 = vsub.f32 1.5, %v66
    %v68 = vmul.f32 %v63, %v67
    %vm69 = vweird.f32 %v61
    %vm70 = vweird.f32 %v63
    %vm71 = vmor %vm69, %vm70
    %v72 = vsel %vm71, %v63, %v68
    %v73 = vrsqrt.pop %v62
    %v74 = vmul.f32 %v73, %v62
    %v75 = vmul.f32 %v74, %v73
    %v76 = vmul.f32 0.5, %v75
    %v77 = vsub.f32 1.5, %v76
    %v78 = vmul.f32 %v73, %v77
    %vm79 = vweird.f32 %v62
    %vm80 = vweird.f32 %v73
    %vm81 = vmor %vm79, %vm80
    %v82 = vsel %vm81, %v73, %v78
    %v83 = vmul.f32 %v49, %v72
    %v84 = vmul.f32 %v50, %v82
    %v85 = vperm.slane %v32, 0
    %v86 = vmul.f32 %v83, %v85
    %v87 = vmul.f32 %v84, %v85
    %v88 = vperm.slane %v32, 1
    %v89 = vadd.f32 %v86, %v88
    %v90 = vadd.f32 %v87, %v88
    %v91 = vld [vmem:[%s1] sm:$0xff]
    %v92 = vld [vmem:[%s1 + $0x8] sm:$0xff]
    %v93 = vld [vmem:[%s1 + $0x10] sm:$0xff]
    %v94 = vld [vmem:[%s1 + $0x18] sm:$0xff]
    %v95 = vld [vmem:[%s2] sm:$0x1]
    %v97 = vperm.slane %v95, 0
    %v100 = vsel %vm33, %v89, 0
    %v103 = vsel %vm33, %v90, 0
    %105 = vmatpush.msra.mxu0 0.0
    %106 = vmatpush.msra.mxu0 0.0
    %107 = vmatpush.msra.mxu0 0.0
    %108 = vmatpush.msra.mxu0 0.0
    %109 = vmatpush.msra.mxu0 0.0
    %110 = vmatpush.msra.mxu0 0.0
    %111 = vmatpush.msra.mxu0 0.0
    %112 = vmatpush.msra.mxu0 0.0
    %113 = vmatpush.msra.mxu0 0.0
    %114 = vmatpush.msra.mxu0 0.0
    %115 = vmatpush.msra.mxu0 0.0
    %116 = vmatpush.msra.mxu0 0.0
    %117 = vmatpush.msra.mxu0 %v94
    %118 = vmatpush.msra.mxu0 %v93
    %119 = vmatpush.msra.mxu0 %v92
    %120 = vmatpush.msra.mxu0 %v91
    %121 = vmatmul.f32.gmra.mxu0 %v100
    %v122 = vpop.f32.mrf.mxu0
    %v123 = vadd.f32 %v97, %v122
    %124 = vmatmul.f32.gmra.mxu0 %v103
    %v125 = vpop.f32.mrf.mxu0
    %v126 = vadd.f32 %v97, %v125
    %127 = vdwg.mxu0
    %129 = vrot.lane.b32.xlu0 %v123, 96
    %v130 = vpop.permute.xlu0 %129
    %vm131 = vcmask 64512
    %v132 = vsel %vm131, %v123, 0
    %v134 = vsel %vm131, %v130, 0
    %136 = vmatpush.xpose.msra.mxu0 0.0
    %137 = vmatpush.xpose.msra.mxu0 0.0
    %138 = vmatpush.xpose.msra.mxu0 0.0
    %139 = vmatpush.xpose.msra.mxu0 0.0
    %140 = vmatpush.xpose.msra.mxu0 0.0
    %141 = vmatpush.xpose.msra.mxu0 0.0
    %142 = vmatpush.xpose.msra.mxu0 0.0
    %143 = vmatpush.xpose.msra.mxu0 0.0
    %144 = vmatpush.xpose.msra.mxu0 0.0
    %145 = vmatpush.xpose.msra.mxu0 0.0
    %146 = vmatpush.xpose.msra.mxu0 0.0
    %147 = vmatpush.xpose.msra.mxu0 0.0
    %148 = vmatpush.xpose.msra.mxu0 0.0
    %149 = vmatpush.xpose.msra.mxu0 0.0
    %150 = vmatpush.xpose.msra.mxu0 0.0
    %151 = vmatpush.xpose.msra.mxu0 %v134
    %152 = vmatmul.f32.gmra.mxu0 %v132
    %v153 = vpop.f32.mrf.mxu0
    %v154 = vadd.f32 0.0, %v153
    %155 = vdwg.mxu0
    %157 = vrot.lane.b32.xlu0 %v126, 96
    %v158 = vpop.permute.xlu0 %157
    %v159 = vsel %vm131, %v126, 0
    %v161 = vsel %vm131, %v158, 0
    %163 = vmatpush.xpose.msra.mxu0 0.0
    %164 = vmatpush.xpose.msra.mxu0 0.0
    %165 = vmatpush.xpose.msra.mxu0 0.0
    %166 = vmatpush.xpose.msra.mxu0 0.0
    %167 = vmatpush.xpose.msra.mxu0 0.0
    %168 = vmatpush.xpose.msra.mxu0 0.0
    %169 = vmatpush.xpose.msra.mxu0 0.0
    %170 = vmatpush.xpose.msra.mxu0 0.0
    %171 = vmatpush.xpose.msra.mxu0 0.0
    %172 = vmatpush.xpose.msra.mxu0 0.0
    %173 = vmatpush.xpose.msra.mxu0 0.0
    %174 = vmatpush.xpose.msra.mxu0 0.0
    %175 = vmatpush.xpose.msra.mxu0 0.0
    %176 = vmatpush.xpose.msra.mxu0 0.0
    %177 = vmatpush.xpose.msra.mxu0 0.0
    %178 = vmatpush.xpose.msra.mxu0 %v161
    %179 = vmatmul.f32.gmra.mxu0 %v159
    %v180 = vpop.f32.mrf.mxu0
    %v181 = vadd.f32 0.0, %v180
    %182 = vdwg.mxu0
    %v183 = vsel %vm131, %v154, -inf
    %184 = vmax.xlane.f32.xlu0 %v183
    %v185 = vpop.xlane.xlu0 %184
    %v186 = vsel %vm131, %v181, -inf
    %187 = vmax.xlane.f32.xlu0 %v186
    %v188 = vpop.xlane.xlu0 %187
    %v189 = vsub.f32 %v154, %v185
    %v190 = vsub.f32 %v181, %v188
    %v191 = vmul.f32 %v189, 1.442695
    %v192 = vpow.pop %v191
    %v193 = vmul.f32 %v190, 1.442695
    %v194 = vpow.pop %v193
    %v195 = vsel %vm131, %v192, 0.0
    %196 = vadd.xlane.f32.xlu0 %v195
    %v197 = vpop.xlane.xlu0 %196
    %v198 = vsel %vm131, %v194, 0.0
    %199 = vadd.xlane.f32.xlu0 %v198
    %v200 = vpop.xlane.xlu0 %199
    %v201 = vrcp.pop %v197
    %v202 = vrcp.pop %v200
    %v203 = vmul.f32 %v192, %v201
    %v204 = vmul.f32 %v194, %v202
    %205 = vrot.lane.b32.xlu0 %v123, 64
    %v206 = vpop.permute.xlu0 %205
    %v209 = vsel %vm131, %v203, 0
    %211 = vmatpush.msra.mxu0 0.0
    %212 = vmatpush.msra.mxu0 0.0
    %213 = vmatpush.msra.mxu0 0.0
    %214 = vmatpush.msra.mxu0 0.0
    %215 = vmatpush.msra.mxu0 0.0
    %216 = vmatpush.msra.mxu0 0.0
    %217 = vmatpush.msra.mxu0 0.0
    %218 = vmatpush.msra.mxu0 0.0
    %219 = vmatpush.msra.mxu0 0.0
    %220 = vmatpush.msra.mxu0 0.0
    %221 = vmatpush.msra.mxu0 0.0
    %222 = vmatpush.msra.mxu0 0.0
    %223 = vmatpush.msra.mxu0 0.0
    %224 = vmatpush.msra.mxu0 0.0
    %225 = vmatpush.msra.mxu0 0.0
    %226 = vmatpush.msra.mxu0 %v206
    %227 = vmatmul.f32.gmra.mxu0 %v209
    %v228 = vpop.f32.mrf.mxu0
    %v229 = vadd.f32 0.0, %v228
    %230 = vdwg.mxu0
    %231 = vrot.lane.b32.xlu0 %v126, 64
    %v232 = vpop.permute.xlu0 %231
    %v235 = vsel %vm131, %v204, 0
    %237 = vmatpush.msra.mxu0 0.0
    %238 = vmatpush.msra.mxu0 0.0
    %239 = vmatpush.msra.mxu0 0.0
    %240 = vmatpush.msra.mxu0 0.0
    %241 = vmatpush.msra.mxu0 0.0
    %242 = vmatpush.msra.mxu0 0.0
    %243 = vmatpush.msra.mxu0 0.0
    %244 = vmatpush.msra.mxu0 0.0
    %245 = vmatpush.msra.mxu0 0.0
    %246 = vmatpush.msra.mxu0 0.0
    %247 = vmatpush.msra.mxu0 0.0
    %248 = vmatpush.msra.mxu0 0.0
    %249 = vmatpush.msra.mxu0 0.0
    %250 = vmatpush.msra.mxu0 0.0
    %251 = vmatpush.msra.mxu0 0.0
    %252 = vmatpush.msra.mxu0 %v232
    %253 = vmatmul.f32.gmra.mxu0 %v235
    %v254 = vpop.f32.mrf.mxu0
    %v255 = vadd.f32 0.0, %v254
    %256 = vdwg.mxu0
    %257 = vrot.lane.b32.xlu0 %v123, 120
    %v258 = vpop.permute.xlu0 %257
    %259 = vrot.lane.b32.xlu0 %v123, 88
    %v260 = vpop.permute.xlu0 %259
    %v261 = vsel %vm131, %v258, 0
    %v263 = vsel %vm131, %v260, 0
    %265 = vmatpush.xpose.msra.mxu0 0.0
    %266 = vmatpush.xpose.msra.mxu0 0.0
    %267 = vmatpush.xpose.msra.mxu0 0.0
    %268 = vmatpush.xpose.msra.mxu0 0.0
    %269 = vmatpush.xpose.msra.mxu0 0.0
    %270 = vmatpush.xpose.msra.mxu0 0.0
    %271 = vmatpush.xpose.msra.mxu0 0.0
    %272 = vmatpush.xpose.msra.mxu0 0.0
    %273 = vmatpush.xpose.msra.mxu0 0.0
    %274 = vmatpush.xpose.msra.mxu0 0.0
    %275 = vmatpush.xpose.msra.mxu0 0.0
    %276 = vmatpush.xpose.msra.mxu0 0.0
    %277 = vmatpush.xpose.msra.mxu0 0.0
    %278 = vmatpush.xpose.msra.mxu0 0.0
    %279 = vmatpush.xpose.msra.mxu0 0.0
    %280 = vmatpush.xpose.msra.mxu0 %v263
    %281 = vmatmul.f32.gmra.mxu0 %v261
    %v282 = vpop.f32.mrf.mxu0
    %v283 = vadd.f32 0.0, %v282
    %284 = vdwg.mxu0
    %285 = vrot.lane.b32.xlu0 %v126, 120
    %v286 = vpop.permute.xlu0 %285
    %287 = vrot.lane.b32.xlu0 %v126, 88
    %v288 = vpop.permute.xlu0 %287
    %v289 = vsel %vm131, %v286, 0
    %v291 = vsel %vm131, %v288, 0
    %293 = vmatpush.xpose.msra.mxu0 0.0
    %294 = vmatpush.xpose.msra.mxu0 0.0
    %295 = vmatpush.xpose.msra.mxu0 0.0
    %296 = vmatpush.xpose.msra.mxu0 0.0
    %297 = vmatpush.xpose.msra.mxu0 0.0
    %298 = vmatpush.xpose.msra.mxu0 0.0
    %299 = vmatpush.xpose.msra.mxu0 0.0
    %300 = vmatpush.xpose.msra.mxu0 0.0
    %301 = vmatpush.xpose.msra.mxu0 0.0
    %302 = vmatpush.xpose.msra.mxu0 0.0
    %303 = vmatpush.xpose.msra.mxu0 0.0
    %304 = vmatpush.xpose.msra.mxu0 0.0
    %305 = vmatpush.xpose.msra.mxu0 0.0
    %306 = vmatpush.xpose.msra.mxu0 0.0
    %307 = vmatpush.xpose.msra.mxu0 0.0
    %308 = vmatpush.xpose.msra.mxu0 %v291
    %309 = vmatmul.f32.gmra.mxu0 %v289
    %v310 = vpop.f32.mrf.mxu0
    %v311 = vadd.f32 0.0, %v310
    %312 = vdwg.mxu0
    %v313 = vsel %vm131, %v283, -inf
    %314 = vmax.xlane.f32.xlu0 %v313
    %v315 = vpop.xlane.xlu0 %314
    %v316 = vsel %vm131, %v311, -inf
    %317 = vmax.xlane.f32.xlu0 %v316
    %v318 = vpop.xlane.xlu0 %317
    %v319 = vsub.f32 %v283, %v315
    %v320 = vsub.f32 %v311, %v318
    %v321 = vmul.f32 %v319, 1.442695
    %v322 = vpow.pop %v321
    %v323 = vmul.f32 %v320, 1.442695
    %v324 = vpow.pop %v323
    %v325 = vsel %vm131, %v322, 0.0
    %326 = vadd.xlane.f32.xlu0 %v325
    %v327 = vpop.xlane.xlu0 %326
    %v328 = vsel %vm131, %v324, 0.0
    %329 = vadd.xlane.f32.xlu0 %v328
    %v330 = vpop.xlane.xlu0 %329
    %v331 = vrcp.pop %v327
    %v332 = vrcp.pop %v330
    %v333 = vmul.f32 %v322, %v331
    %v334 = vmul.f32 %v324, %v332
    %335 = vrot.lane.b32.xlu0 %v123, 56
    %v336 = vpop.permute.xlu0 %335
    %v339 = vsel %vm131, %v333, 0
    %341 = vmatpush.msra.mxu0 0.0
    %342 = vmatpush.msra.mxu0 0.0
    %343 = vmatpush.msra.mxu0 0.0
    %344 = vmatpush.msra.mxu0 0.0
    %345 = vmatpush.msra.mxu0 0.0
    %346 = vmatpush.msra.mxu0 0.0
    %347 = vmatpush.msra.mxu0 0.0
    %348 = vmatpush.msra.mxu0 0.0
    %349 = vmatpush.msra.mxu0 0.0
    %350 = vmatpush.msra.mxu0 0.0
    %351 = vmatpush.msra.mxu0 0.0
    %352 = vmatpush.msra.mxu0 0.0
    %353 = vmatpush.msra.mxu0 0.0
    %354 = vmatpush.msra.mxu0 0.0
    %355 = vmatpush.msra.mxu0 0.0
    %356 = vmatpush.msra.mxu0 %v336
    %357 = vmatmul.f32.gmra.mxu0 %v339
    %v358 = vpop.f32.mrf.mxu0
    %v359 = vadd.f32 0.0, %v358
    %360 = vdwg.mxu0
    %361 = vrot.lane.b32.xlu0 %v126, 56
    %v362 = vpop.permute.xlu0 %361
    %v365 = vsel %vm131, %v334, 0
    %367 = vmatpush.msra.mxu0 0.0
    %368 = vmatpush.msra.mxu0 0.0
    %369 = vmatpush.msra.mxu0 0.0
    %370 = vmatpush.msra.mxu0 0.0
    %371 = vmatpush.msra.mxu0 0.0
    %372 = vmatpush.msra.mxu0 0.0
    %373 = vmatpush.msra.mxu0 0.0
    %374 = vmatpush.msra.mxu0 0.0
    %375 = vmatpush.msra.mxu0 0.0
    %376 = vmatpush.msra.mxu0 0.0
    %377 = vmatpush.msra.mxu0 0.0
    %378 = vmatpush.msra.mxu0 0.0
    %379 = vmatpush.msra.mxu0 0.0
    %380 = vmatpush.msra.mxu0 0.0
    %381 = vmatpush.msra.mxu0 0.0
    %382 = vmatpush.msra.mxu0 %v362
    %383 = vmatmul.f32.gmra.mxu0 %v365
    %v384 = vpop.f32.mrf.mxu0
    %v385 = vadd.f32 0.0, %v384
    %386 = vdwg.mxu0
    %387 = vrot.lane.b32.xlu0 %v123, 112
    %v388 = vpop.permute.xlu0 %387
    %389 = vrot.lane.b32.xlu0 %v123, 80
    %v390 = vpop.permute.xlu0 %389
    %v391 = vsel %vm131, %v388, 0
    %v393 = vsel %vm131, %v390, 0
    %395 = vmatpush.xpose.msra.mxu0 0.0
    %396 = vmatpush.xpose.msra.mxu0 0.0
    %397 = vmatpush.xpose.msra.mxu0 0.0
    %398 = vmatpush.xpose.msra.mxu0 0.0
    %399 = vmatpush.xpose.msra.mxu0 0.0
    %400 = vmatpush.xpose.msra.mxu0 0.0
    %401 = vmatpush.xpose.msra.mxu0 0.0
    %402 = vmatpush.xpose.msra.mxu0 0.0
    %403 = vmatpush.xpose.msra.mxu0 0.0
    %404 = vmatpush.xpose.msra.mxu0 0.0
    %405 = vmatpush.xpose.msra.mxu0 0.0
    %406 = vmatpush.xpose.msra.mxu0 0.0
    %407 = vmatpush.xpose.msra.mxu0 0.0
    %408 = vmatpush.xpose.msra.mxu0 0.0
    %409 = vmatpush.xpose.msra.mxu0 0.0
    %410 = vmatpush.xpose.msra.mxu0 %v393
    %411 = vmatmul.f32.gmra.mxu0 %v391
    %v412 = vpop.f32.mrf.mxu0
    %v413 = vadd.f32 0.0, %v412
    %414 = vdwg.mxu0
    %415 = vrot.lane.b32.xlu0 %v126, 112
    %v416 = vpop.permute.xlu0 %415
    %417 = vrot.lane.b32.xlu0 %v126, 80
    %v418 = vpop.permute.xlu0 %417
    %v419 = vsel %vm131, %v416, 0
    %v421 = vsel %vm131, %v418, 0
    %423 = vmatpush.xpose.msra.mxu0 0.0
    %424 = vmatpush.xpose.msra.mxu0 0.0
    %425 = vmatpush.xpose.msra.mxu0 0.0
    %426 = vmatpush.xpose.msra.mxu0 0.0
    %427 = vmatpush.xpose.msra.mxu0 0.0
    %428 = vmatpush.xpose.msra.mxu0 0.0
    %429 = vmatpush.xpose.msra.mxu0 0.0
    %430 = vmatpush.xpose.msra.mxu0 0.0
    %431 = vmatpush.xpose.msra.mxu0 0.0
    %432 = vmatpush.xpose.msra.mxu0 0.0
    %433 = vmatpush.xpose.msra.mxu0 0.0
    %434 = vmatpush.xpose.msra.mxu0 0.0
    %435 = vmatpush.xpose.msra.mxu0 0.0
    %436 = vmatpush.xpose.msra.mxu0 0.0
    %437 = vmatpush.xpose.msra.mxu0 0.0
    %438 = vmatpush.xpose.msra.mxu0 %v421
    %439 = vmatmul.f32.gmra.mxu0 %v419
    %v440 = vpop.f32.mrf.mxu0
    %v441 = vadd.f32 0.0, %v440
    %442 = vdwg.mxu0
    %v443 = vsel %vm131, %v413, -inf
    %444 = vmax.xlane.f32.xlu0 %v443
    %v445 = vpop.xlane.xlu0 %444
    %v446 = vsel %vm131, %v441, -inf
    %447 = vmax.xlane.f32.xlu0 %v446
    %v448 = vpop.xlane.xlu0 %447
    %v449 = vsub.f32 %v413, %v445
    %v450 = vsub.f32 %v441, %v448
    %v451 = vmul.f32 %v449, 1.442695
    %v452 = vpow.pop %v451
    %v453 = vmul.f32 %v450, 1.442695
    %v454 = vpow.pop %v453
    %v455 = vsel %vm131, %v452, 0.0
    %456 = vadd.xlane.f32.xlu0 %v455
    %v457 = vpop.xlane.xlu0 %456
    %v458 = vsel %vm131, %v454, 0.0
    %459 = vadd.xlane.f32.xlu0 %v458
    %v460 = vpop.xlane.xlu0 %459
    %v461 = vrcp.pop %v457
    %v462 = vrcp.pop %v460
    %v463 = vmul.f32 %v452, %v461
    %v464 = vmul.f32 %v454, %v462
    %465 = vrot.lane.b32.xlu0 %v123, 48
    %v466 = vpop.permute.xlu0 %465
    %v469 = vsel %vm131, %v463, 0
    %471 = vmatpush.msra.mxu0 0.0
    %472 = vmatpush.msra.mxu0 0.0
    %473 = vmatpush.msra.mxu0 0.0
    %474 = vmatpush.msra.mxu0 0.0
    %475 = vmatpush.msra.mxu0 0.0
    %476 = vmatpush.msra.mxu0 0.0
    %477 = vmatpush.msra.mxu0 0.0
    %478 = vmatpush.msra.mxu0 0.0
    %479 = vmatpush.msra.mxu0 0.0
    %480 = vmatpush.msra.mxu0 0.0
    %481 = vmatpush.msra.mxu0 0.0
    %482 = vmatpush.msra.mxu0 0.0
    %483 = vmatpush.msra.mxu0 0.0
    %484 = vmatpush.msra.mxu0 0.0
    %485 = vmatpush.msra.mxu0 0.0
    %486 = vmatpush.msra.mxu0 %v466
    %487 = vmatmul.f32.gmra.mxu0 %v469
    %v488 = vpop.f32.mrf.mxu0
    %v489 = vadd.f32 0.0, %v488
    %490 = vdwg.mxu0
    %491 = vrot.lane.b32.xlu0 %v126, 48
    %v492 = vpop.permute.xlu0 %491
    %v495 = vsel %vm131, %v464, 0
    %497 = vmatpush.msra.mxu0 0.0
    %498 = vmatpush.msra.mxu0 0.0
    %499 = vmatpush.msra.mxu0 0.0
    %500 = vmatpush.msra.mxu0 0.0
    %501 = vmatpush.msra.mxu0 0.0
    %502 = vmatpush.msra.mxu0 0.0
    %503 = vmatpush.msra.mxu0 0.0
    %504 = vmatpush.msra.mxu0 0.0
    %505 = vmatpush.msra.mxu0 0.0
    %506 = vmatpush.msra.mxu0 0.0
    %507 = vmatpush.msra.mxu0 0.0
    %508 = vmatpush.msra.mxu0 0.0
    %509 = vmatpush.msra.mxu0 0.0
    %510 = vmatpush.msra.mxu0 0.0
    %511 = vmatpush.msra.mxu0 0.0
    %512 = vmatpush.msra.mxu0 %v492
    %513 = vmatmul.f32.gmra.mxu0 %v495
    %v514 = vpop.f32.mrf.mxu0
    %v515 = vadd.f32 0.0, %v514
    %516 = vdwg.mxu0
    %517 = vrot.lane.b32.xlu0 %v123, 104
    %v518 = vpop.permute.xlu0 %517
    %519 = vrot.lane.b32.xlu0 %v123, 72
    %v520 = vpop.permute.xlu0 %519
    %v521 = vsel %vm131, %v518, 0
    %v523 = vsel %vm131, %v520, 0
    %525 = vmatpush.xpose.msra.mxu0 0.0
    %526 = vmatpush.xpose.msra.mxu0 0.0
    %527 = vmatpush.xpose.msra.mxu0 0.0
    %528 = vmatpush.xpose.msra.mxu0 0.0
    %529 = vmatpush.xpose.msra.mxu0 0.0
    %530 = vmatpush.xpose.msra.mxu0 0.0
    %531 = vmatpush.xpose.msra.mxu0 0.0
    %532 = vmatpush.xpose.msra.mxu0 0.0
    %533 = vmatpush.xpose.msra.mxu0 0.0
    %534 = vmatpush.xpose.msra.mxu0 0.0
    %535 = vmatpush.xpose.msra.mxu0 0.0
    %536 = vmatpush.xpose.msra.mxu0 0.0
    %537 = vmatpush.xpose.msra.mxu0 0.0
    %538 = vmatpush.xpose.msra.mxu0 0.0
    %539 = vmatpush.xpose.msra.mxu0 0.0
    %540 = vmatpush.xpose.msra.mxu0 %v523
    %541 = vmatmul.f32.gmra.mxu0 %v521
    %v542 = vpop.f32.mrf.mxu0
    %v543 = vadd.f32 0.0, %v542
    %544 = vdwg.mxu0
    %545 = vrot.lane.b32.xlu0 %v126, 104
    %v546 = vpop.permute.xlu0 %545
    %547 = vrot.lane.b32.xlu0 %v126, 72
    %v548 = vpop.permute.xlu0 %547
    %v549 = vsel %vm131, %v546, 0
    %v551 = vsel %vm131, %v548, 0
    %553 = vmatpush.xpose.msra.mxu0 0.0
    %554 = vmatpush.xpose.msra.mxu0 0.0
    %555 = vmatpush.xpose.msra.mxu0 0.0
    %556 = vmatpush.xpose.msra.mxu0 0.0
    %557 = vmatpush.xpose.msra.mxu0 0.0
    %558 = vmatpush.xpose.msra.mxu0 0.0
    %559 = vmatpush.xpose.msra.mxu0 0.0
    %560 = vmatpush.xpose.msra.mxu0 0.0
    %561 = vmatpush.xpose.msra.mxu0 0.0
    %562 = vmatpush.xpose.msra.mxu0 0.0
    %563 = vmatpush.xpose.msra.mxu0 0.0
    %564 = vmatpush.xpose.msra.mxu0 0.0
    %565 = vmatpush.xpose.msra.mxu0 0.0
    %566 = vmatpush.xpose.msra.mxu0 0.0
    %567 = vmatpush.xpose.msra.mxu0 0.0
    %568 = vmatpush.xpose.msra.mxu0 %v551
    %569 = vmatmul.f32.gmra.mxu0 %v549
    %v570 = vpop.f32.mrf.mxu0
    %v571 = vadd.f32 0.0, %v570
    %572 = vdwg.mxu0
    %v573 = vsel %vm131, %v543, -inf
    %574 = vmax.xlane.f32.xlu0 %v573
    %v575 = vpop.xlane.xlu0 %574
    %v576 = vsel %vm131, %v571, -inf
    %577 = vmax.xlane.f32.xlu0 %v576
    %v578 = vpop.xlane.xlu0 %577
    %v579 = vsub.f32 %v543, %v575
    %v580 = vsub.f32 %v571, %v578
    %v581 = vmul.f32 %v579, 1.442695
    %v582 = vpow.pop %v581
    %v583 = vmul.f32 %v580, 1.442695
    %v584 = vpow.pop %v583
    %v585 = vsel %vm131, %v582, 0.0
    %586 = vadd.xlane.f32.xlu0 %v585
    %v587 = vpop.xlane.xlu0 %586
    %v588 = vsel %vm131, %v584, 0.0
    %589 = vadd.xlane.f32.xlu0 %v588
    %v590 = vpop.xlane.xlu0 %589
    %v591 = vrcp.pop %v587
    %v592 = vrcp.pop %v590
    %v593 = vmul.f32 %v582, %v591
    %v594 = vmul.f32 %v584, %v592
    %595 = vrot.lane.b32.xlu0 %v123, 40
    %v596 = vpop.permute.xlu0 %595
    %v599 = vsel %vm131, %v593, 0
    %601 = vmatpush.msra.mxu0 0.0
    %602 = vmatpush.msra.mxu0 0.0
    %603 = vmatpush.msra.mxu0 0.0
    %604 = vmatpush.msra.mxu0 0.0
    %605 = vmatpush.msra.mxu0 0.0
    %606 = vmatpush.msra.mxu0 0.0
    %607 = vmatpush.msra.mxu0 0.0
    %608 = vmatpush.msra.mxu0 0.0
    %609 = vmatpush.msra.mxu0 0.0
    %610 = vmatpush.msra.mxu0 0.0
    %611 = vmatpush.msra.mxu0 0.0
    %612 = vmatpush.msra.mxu0 0.0
    %613 = vmatpush.msra.mxu0 0.0
    %614 = vmatpush.msra.mxu0 0.0
    %615 = vmatpush.msra.mxu0 0.0
    %616 = vmatpush.msra.mxu0 %v596
    %617 = vmatmul.f32.gmra.mxu0 %v599
    %v618 = vpop.f32.mrf.mxu0
    %v619 = vadd.f32 0.0, %v618
    %620 = vdwg.mxu0
    %621 = vrot.lane.b32.xlu0 %v126, 40
    %v622 = vpop.permute.xlu0 %621
    %v625 = vsel %vm131, %v594, 0
    %627 = vmatpush.msra.mxu0 0.0
    %628 = vmatpush.msra.mxu0 0.0
    %629 = vmatpush.msra.mxu0 0.0
    %630 = vmatpush.msra.mxu0 0.0
    %631 = vmatpush.msra.mxu0 0.0
    %632 = vmatpush.msra.mxu0 0.0
    %633 = vmatpush.msra.mxu0 0.0
    %634 = vmatpush.msra.mxu0 0.0
    %635 = vmatpush.msra.mxu0 0.0
    %636 = vmatpush.msra.mxu0 0.0
    %637 = vmatpush.msra.mxu0 0.0
    %638 = vmatpush.msra.mxu0 0.0
    %639 = vmatpush.msra.mxu0 0.0
    %640 = vmatpush.msra.mxu0 0.0
    %641 = vmatpush.msra.mxu0 0.0
    %642 = vmatpush.msra.mxu0 %v622
    %643 = vmatmul.f32.gmra.mxu0 %v625
    %v644 = vpop.f32.mrf.mxu0
    %v645 = vadd.f32 0.0, %v644
    %646 = vdwg.mxu0
    %649 = vrot.lane.b32.xlu0 %v359, 8
    %v650 = vpop.permute.xlu0 %649
    %651 = vrot.lane.b32.xlu0 %v385, 8
    %v652 = vpop.permute.xlu0 %651
    %657 = vrot.lane.b32.xlu0 %v489, 16
    %v658 = vpop.permute.xlu0 %657
    %659 = vrot.lane.b32.xlu0 %v515, 16
    %v660 = vpop.permute.xlu0 %659
    %665 = vrot.lane.b32.xlu0 %v619, 24
    %v666 = vpop.permute.xlu0 %665
    %667 = vrot.lane.b32.xlu0 %v645, 24
    %v668 = vpop.permute.xlu0 %667
    %v671 = vsel %vm131, %v229, %v650
    %v672 = vsel %vm131, %v255, %v652
    %vm673 = vcmask 130048
    %v674 = vsel %vm673, %v671, %v658
    %v675 = vsel %vm673, %v672, %v660
    %vm676 = vcmask 195584
    %v677 = vsel %vm676, %v674, %v666
    %v678 = vsel %vm676, %v675, %v668
    %v679 = vld [vmem:[%s3] sm:$0xff]
    %v680 = vld [vmem:[%s3 + $0x8] sm:$0xff]
    %v681 = vld [vmem:[%s3 + $0x10] sm:$0xff]
    %v682 = vld [vmem:[%s3 + $0x18] sm:$0xff]
    %v684 = vsel %vm33, %v677, 0
    %v687 = vsel %vm33, %v678, 0
    %689 = vmatpush.msra.mxu0 0.0
    %690 = vmatpush.msra.mxu0 0.0
    %691 = vmatpush.msra.mxu0 0.0
    %692 = vmatpush.msra.mxu0 0.0
    %693 = vmatpush.msra.mxu0 0.0
    %694 = vmatpush.msra.mxu0 0.0
    %695 = vmatpush.msra.mxu0 0.0
    %696 = vmatpush.msra.mxu0 0.0
    %697 = vmatpush.msra.mxu0 0.0
    %698 = vmatpush.msra.mxu0 0.0
    %699 = vmatpush.msra.mxu0 0.0
    %700 = vmatpush.msra.mxu0 0.0
    %701 = vmatpush.msra.mxu0 %v682
    %702 = vmatpush.msra.mxu0 %v681
    %703 = vmatpush.msra.mxu0 %v680
    %704 = vmatpush.msra.mxu0 %v679
    %705 = vmatmul.f32.gmra.mxu0 %v684
    %v706 = vpop.f32.mrf.mxu0
    %v707 = vadd.f32 0.0, %v706
    %708 = vmatmul.f32.gmra.mxu0 %v687
    %v709 = vpop.f32.mrf.mxu0
    %v710 = vadd.f32 0.0, %v709
    %711 = vdwg.mxu0
    %v712 = vadd.f32 %v30, %v707
    %v713 = vadd.f32 %v31, %v710
    %v714 = vperm.slane %v32, 4
    %v715 = vadd.f32 %v712, %v714
    %v716 = vadd.f32 %v713, %v714
    %v717 = vsel %vm33, %v715, 0.0
    %718 = vadd.xlane.f32.xlu0 %v717
    %v719 = vpop.xlane.xlu0 %718
    %v720 = vsel %vm33, %v716, 0.0
    %721 = vadd.xlane.f32.xlu0 %v720
    %v722 = vpop.xlane.xlu0 %721
    %v723 = vmul.f32 %v719, %v46
    %v724 = vmul.f32 %v722, %v46
    %v725 = vsub.f32 %v715, %v723
    %v726 = vsub.f32 %v716, %v724
    %v727 = vmul.f32 %v725, %v725
    %v728 = vmul.f32 %v726, %v726
    %v729 = vsel %vm33, %v727, 0.0
    %730 = vadd.xlane.f32.xlu0 %v729
    %v731 = vpop.xlane.xlu0 %730
    %v732 = vsel %vm33, %v728, 0.0
    %733 = vadd.xlane.f32.xlu0 %v732
    %v734 = vpop.xlane.xlu0 %733
    %v735 = vmul.f32 %v731, %v46
    %v736 = vmul.f32 %v734, %v46
    %v737 = vadd.f32 %v735, 1e-05
    %v738 = vadd.f32 %v736, 1e-05
    %v739 = vrsqrt.pop %v737
    %v740 = vmul.f32 %v739, %v737
    %v741 = vmul.f32 %v740, %v739
    %v742 = vmul.f32 0.5, %v741
    %v743 = vsub.f32 1.5, %v742
    %v744 = vmul.f32 %v739, %v743
    %vm745 = vweird.f32 %v737
    %vm746 = vweird.f32 %v739
    %vm747 = vmor %vm745, %vm746
    %v748 = vsel %vm747, %v739, %v744
    %v749 = vrsqrt.pop %v738
    %v750 = vmul.f32 %v749, %v738
    %v751 = vmul.f32 %v750, %v749
    %v752 = vmul.f32 0.5, %v751
    %v753 = vsub.f32 1.5, %v752
    %v754 = vmul.f32 %v749, %v753
    %vm755 = vweird.f32 %v738
    %vm756 = vweird.f32 %v749
    %vm757 = vmor %vm755, %vm756
    %v758 = vsel %vm757, %v749, %v754
    %v759 = vmul.f32 %v725, %v748
    %v760 = vmul.f32 %v726, %v758
    %v761 = vperm.slane %v32, 2
    %v762 = vmul.f32 %v759, %v761
    %v763 = vmul.f32 %v760, %v761
    %v764 = vperm.slane %v32, 3
    %v765 = vadd.f32 %v762, %v764
    %v766 = vadd.f32 %v763, %v764
    %v767 = vld [vmem:[%s4] sm:$0xff]
    %v768 = vld [vmem:[%s4 + $0x8] sm:$0xff]
    %v769 = vld [vmem:[%s4 + $0x10] sm:$0xff]
    %v770 = vld [vmem:[%s4 + $0x18] sm:$0xff]
    %v771 = vld [vmem:[%s5] sm:$0x1]
    %v773 = vperm.slane %v771, 0
    %v776 = vsel %vm33, %v765, 0
    %v779 = vsel %vm33, %v766, 0
    %781 = vmatpush.msra.mxu0 0.0
    %782 = vmatpush.msra.mxu0 0.0
    %783 = vmatpush.msra.mxu0 0.0
    %784 = vmatpush.msra.mxu0 0.0
    %785 = vmatpush.msra.mxu0 0.0
    %786 = vmatpush.msra.mxu0 0.0
    %787 = vmatpush.msra.mxu0 0.0
    %788 = vmatpush.msra.mxu0 0.0
    %789 = vmatpush.msra.mxu0 0.0
    %790 = vmatpush.msra.mxu0 0.0
    %791 = vmatpush.msra.mxu0 0.0
    %792 = vmatpush.msra.mxu0 0.0
    %793 = vmatpush.msra.mxu0 %v770
    %794 = vmatpush.msra.mxu0 %v769
    %795 = vmatpush.msra.mxu0 %v768
    %796 = vmatpush.msra.mxu0 %v767
    %797 = vmatmul.f32.gmra.mxu0 %v776
    %v798 = vpop.f32.mrf.mxu0
    %v799 = vadd.f32 %v773, %v798
    %800 = vmatmul.f32.gmra.mxu0 %v779
    %v801 = vpop.f32.mrf.mxu0
    %v802 = vadd.f32 %v773, %v801
    %803 = vdwg.mxu0
    %v804 = vmul.f32 %v799, 0.5
    %v805 = vmul.f32 %v802, 0.5
    %v806 = vmul.f32 %v799, 0.70710677
    %v807 = vmul.f32 %v802, 0.70710677
    %v808 = vmul.f32 %v806, %v806
    %v809 = vmin.f32 16.0, %v808
    %v810 = vmul.f32 %v809, 2.1237322e-06
    %v811 = vadd.f32 %v810, 0.00028619796
    %v812 = vmul.f32 %v809, %v811
    %v813 = vadd.f32 %v812, 0.0036580483
    %v814 = vmul.f32 %v809, %v813
    %v815 = vadd.f32 %v814, 0.05243302
    %v816 = vmul.f32 %v809, %v815
    %v817 = vadd.f32 %v816, 0.18741608
    %v818 = vmul.f32 %v809, %v817
    %v819 = vadd.f32 %v818, 1.1283791
    %v820 = vmul.f32 %v806, %v819
    %v821 = vmul.f32 %v809, 3.8918573e-05
    %v822 = vadd.f32 %v821, 0.001143296
    %v823 = vmul.f32 %v809, %v822
    %v824 = vadd.f32 %v823, 0.014752088
    %v825 = vmul.f32 %v809, %v824
    %v826 = vadd.f32 %v825, 0.112945676
    %v827 = vmul.f32 %v809, %v826
    %v828 = vadd.f32 %v827, 0.4994258
    %v829 = vmul.f32 %v809, %v828
    %v830 = vadd.f32 %v829, 1.0
    %v831 = vrcp.pop %v830
    %v832 = vmul.f32 %v830, %v831
    %v833 = vsub.f32 1.0, %v832
    %v834 = vmul.f32 %v831, %v833
    %v835 = vadd.f32 %v831, %v834
    %vm836 = vweird.f32 %v830
    %vm837 = vweird.f32 %v831
    %vm838 = vmor %vm836, %vm837
    %v839 = vsel %vm838, %v831, %v835
    %v840 = vand.u32 2147483647, %v830
    %vm841 = vcmp.eq.f32.partialorder %v840, 8.507059e+37
    %v842 = vand.u32 %v830, 2147483648
    %v843 = vor.u32 1.1754944e-38, %v842
    %v844 = vsel %vm841, %v843, %v839
    %v845 = vmul.f32 %v820, %v844
    %v846 = vmin.f32 %v845, 1.0
    %v847 = vmax.f32 %v846, -1.0
    %v848 = vmul.f32 %v807, %v807
    %v849 = vmin.f32 16.0, %v848
    %v850 = vmul.f32 %v849, 2.1237322e-06
    %v851 = vadd.f32 %v850, 0.00028619796
    %v852 = vmul.f32 %v849, %v851
    %v853 = vadd.f32 %v852, 0.0036580483
    %v854 = vmul.f32 %v849, %v853
    %v855 = vadd.f32 %v854, 0.05243302
    %v856 = vmul.f32 %v849, %v855
    %v857 = vadd.f32 %v856, 0.18741608
    %v858 = vmul.f32 %v849, %v857
    %v859 = vadd.f32 %v858, 1.1283791
    %v860 = vmul.f32 %v807, %v859
    %v861 = vmul.f32 %v849, 3.8918573e-05
    %v862 = vadd.f32 %v861, 0.001143296
    %v863 = vmul.f32 %v849, %v862
    %v864 = vadd.f32 %v863, 0.014752088
    %v865 = vmul.f32 %v849, %v864
    %v866 = vadd.f32 %v865, 0.112945676
    %v867 = vmul.f32 %v849, %v866
    %v868 = vadd.f32 %v867, 0.4994258
    %v869 = vmul.f32 %v849, %v868
    %v870 = vadd.f32 %v869, 1.0
    %v871 = vrcp.pop %v870
    %v872 = vmul.f32 %v870, %v871
    %v873 = vsub.f32 1.0, %v872
    %v874 = vmul.f32 %v871, %v873
    %v875 = vadd.f32 %v871, %v874
    %vm876 = vweird.f32 %v870
    %vm877 = vweird.f32 %v871
    %vm878 = vmor %vm876, %vm877
    %v879 = vsel %vm878, %v871, %v875
    %v880 = vand.u32 2147483647, %v870
    %vm881 = vcmp.eq.f32.partialorder %v880, 8.507059e+37
    %v882 = vand.u32 %v870, 2147483648
    %v883 = vor.u32 1.1754944e-38, %v882
    %v884 = vsel %vm881, %v883, %v879
    %v885 = vmul.f32 %v860, %v884
    %v886 = vmin.f32 %v885, 1.0
    %v887 = vmax.f32 %v886, -1.0
    %v888 = vadd.f32 %v847, 1.0
    %v889 = vadd.f32 %v887, 1.0
    %v890 = vmul.f32 %v804, %v888
    %v891 = vmul.f32 %v805, %v889
    %v892 = vld [vmem:[%s6] sm:$0xff]
    %v893 = vld [vmem:[%s6 + $0x8] sm:$0xff]
    %v894 = vld [vmem:[%s6 + $0x10] sm:$0xff]
    %v895 = vld [vmem:[%s6 + $0x18] sm:$0xff]
    %v896 = vld [vmem:[%s6 + $0x20] sm:$0xff]
    %v897 = vld [vmem:[%s6 + $0x28] sm:$0xff]
    %v898 = vld [vmem:[%s6 + $0x30] sm:$0xff]
    %v899 = vld [vmem:[%s6 + $0x38] sm:$0xff]
    %v900 = vld [vmem:[%s6 + $0x40] sm:$0xff]
    %v901 = vld [vmem:[%s6 + $0x48] sm:$0xff]
    %v902 = vld [vmem:[%s6 + $0x50] sm:$0xff]
    %v903 = vld [vmem:[%s6 + $0x58] sm:$0xff]
    %v904 = vld [vmem:[%s6 + $0x60] sm:$0xff]
    %v905 = vld [vmem:[%s6 + $0x68] sm:$0xff]
    %v906 = vld [vmem:[%s6 + $0x70] sm:$0xff]
    %v907 = vld [vmem:[%s6 + $0x78] sm:$0xff]
    %908 = vmatpush.msra.mxu0 %v907
    %909 = vmatpush.msra.mxu0 %v906
    %910 = vmatpush.msra.mxu0 %v905
    %911 = vmatpush.msra.mxu0 %v904
    %912 = vmatpush.msra.mxu0 %v903
    %913 = vmatpush.msra.mxu0 %v902
    %914 = vmatpush.msra.mxu0 %v901
    %915 = vmatpush.msra.mxu0 %v900
    %916 = vmatpush.msra.mxu0 %v899
    %917 = vmatpush.msra.mxu0 %v898
    %918 = vmatpush.msra.mxu0 %v897
    %919 = vmatpush.msra.mxu0 %v896
    %920 = vmatpush.msra.mxu0 %v895
    %921 = vmatpush.msra.mxu0 %v894
    %922 = vmatpush.msra.mxu0 %v893
    %923 = vmatpush.msra.mxu0 %v892
    %924 = vmatmul.f32.gmra.mxu0 %v890
    %v925 = vpop.f32.mrf.mxu0
    %v926 = vadd.f32 0.0, %v925
    %927 = vmatmul.f32.gmra.mxu0 %v891
    %v928 = vpop.f32.mrf.mxu0
    %v929 = vadd.f32 0.0, %v928
    %930 = vdwg.mxu0
    %v931 = vadd.f32 %v715, %v926
    %v932 = vadd.f32 %v716, %v929
    %v933 = vperm.slane %v32, 5
    %v934 = vadd.f32 %v931, %v933
    %v935 = vadd.f32 %v932, %v933
    %v937 = vrot.slane %v934, 4
    %938 = vrot.lane.b32.xlu0 %v937, 32
    %v939 = vpop.permute.xlu0 %938
    %942 = vrot.lane.b32.xlu0 %v935, 64
    %v943 = vpop.permute.xlu0 %942
    %v945 = vrot.slane %v935, 4
    %946 = vrot.lane.b32.xlu0 %v945, 96
    %v947 = vpop.permute.xlu0 %946
    %v949 = vsel %vm33, %v934, %v939
    %vm950 = vcmask 523264
    %v951 = vsel %vm950, %v949, %v943
    %vm952 = vcmask 785408
    %v953 = vsel %vm952, %v951, %v947
    %954 = vst [vmem:[#allocation2] sm:$0xf] %v953
    // Predicated region
    $region34: #{tpu_custom_call.1} parent=1 // pred_check
      _
    $region35: #{tpu_custom_call.1} parent=1 // pred_check_branch
      %956 = sbr.rel (0) target = $region37
    $region36: #{tpu_custom_call.1} parent=1 // pred_region
      %958 = vsyncadd [#allocation3], 0
      %s960 = sshll.u32 [#allocation2], 4
      %s961 = int_to_ptr.vmem [resolvable:$true] %s960
      %s962 = sshll.u32 %s8, 4
      %s963 = int_to_ptr.hbm [resolvable:$true] %s962
      %965 = dma.vmem_to_hbm [thread:$0]  %s961, 64, %s963, [#allocation3]
    $region37: #{tpu_custom_call.1} parent=1 // pred_fallthru
      _
    // Predicated region
    $region38: #{tpu_custom_call.1} parent=1 // pred_check
      _
    $region39: #{tpu_custom_call.1} parent=1 // pred_check_branch
      %967 = sbr.rel (0) target = $region41
    $region40: #{tpu_custom_call.1} parent=1 // pred_region
      %969 = dma.done [#allocation3], 64
    $region41: #{tpu_custom_call.1} parent=1 // pred_fallthru
      _
    %970 = vsyncpa [#allocation3], 1

</llo_original>
